<compile_context>
chip_gen: v7x
topology: tpu7x:2x2x1
jax: 0.10.0
libtpu: 0.0.40
codegen_flags: <defaults>
</compile_context>

<pallas_src>
import jax
import jax.numpy as jnp
from jax.experimental import pallas as pl
from jax.experimental.pallas import tpu as pltpu

_EPS_COS = 1e-12  # matches ATen cosine_embedding_loss EPSILON


def _round_up(x, m):
    return ((x + m - 1) // m) * m


def _make_kernel(batch, tile_b):
    def kernel(y_ref, yu_ref, t_ref, s_ref, sc_ref, su_ref, out_ref):
        # ---- BCE-with-logits partial sums over a lane-dense (ROWS, 128) slab ----
        y = y_ref[...].astype(jnp.float32)
        yu = yu_ref[...].astype(jnp.float32)
        t = t_ref[...].astype(jnp.float32)

        mask = t == t                          # NaN == unlabeled (also covers slab padding)
        t_safe = jnp.where(mask, t, 0.0)

        def bce(x):
            # numerically stable: max(x,0) - x*y + log(1 + exp(-|x|))  (log1p/exp -> EUP)
            return jnp.maximum(x, 0.0) - x * t_safe + jnp.log1p(jnp.exp(-jnp.abs(x)))

        sum_bce_y = jnp.sum(jnp.where(mask, bce(y), 0.0))
        sum_bce_yu = jnp.sum(jnp.where(mask, bce(yu), 0.0))
        sum_mask = jnp.sum(mask.astype(jnp.float32))

        # ---- Cosine-embedding partial sums over feature-major (D, TILE_B) tiles ----
        s = s_ref[...].astype(jnp.float32)
        sc = sc_ref[...].astype(jnp.float32)
        su = su_ref[...].astype(jnp.float32)

        lane = jax.lax.broadcasted_iota(jnp.int32, (1, tile_b), 1)
        col = pl.program_id(0) * tile_b + lane
        valid = col < batch                    # mask out zero-padded batch columns

        mag_s = jnp.sum(s * s, axis=0, keepdims=True) + _EPS_COS

        dot_c = jnp.sum(s * sc, axis=0, keepdims=True)
        mag_c = jnp.sum(sc * sc, axis=0, keepdims=True) + _EPS_COS
        cos_c = dot_c * jax.lax.rsqrt(mag_s * mag_c)
        sum_close = jnp.sum(jnp.where(valid, 1.0 - cos_c, 0.0))               # target = +1

        dot_f = jnp.sum(s * su, axis=0, keepdims=True)
        mag_f = jnp.sum(su * su, axis=0, keepdims=True) + _EPS_COS
        cos_f = dot_f * jax.lax.rsqrt(mag_s * mag_f)
        sum_far = jnp.sum(jnp.where(valid, jnp.maximum(cos_f, 0.0), 0.0))     # target = -1, margin 0

        # ---- Emit partial sums as one lane-dense (8, 128) block: sublane k holds partial k ----
        sub = jax.lax.broadcasted_iota(jnp.int32, (8, 128), 0)
        vec = jnp.where(sub == 0, sum_bce_y, jnp.zeros((8, 128), jnp.float32))
        vec = jnp.where(sub == 1, sum_bce_yu, vec)
        vec = jnp.where(sub == 2, sum_mask, vec)
        vec = jnp.where(sub == 3, sum_close, vec)
        vec = jnp.where(sub == 4, sum_far, vec)
        out_ref[0, :, :] = vec

    return kernel


def disent_criterion_cos_loss(y_pred, y_pred_label_unchange, target,
                              s_pred, s_pred_label_change, s_pred_label_unchange,
                              beta_set=(1.0, 1.0, 1.0), tile_b=2048):
    """DisentCriterion(criterion_name='cos_loss').forward -> scalar float32 loss."""
    _beta1, beta2, _beta3 = beta_set
    B, C = y_pred.shape
    _, D = s_pred.shape

    # ---- layout plumbing (wrapper-side, not in-kernel) ----
    tile_cols = min(_round_up(B, 128), _round_up(int(tile_b), 128))
    num_tiles = (B + tile_cols - 1) // tile_cols
    b_pad = num_tiles * tile_cols

    # Lane-dense BCE slabs: flatten (B, C) -> (num_tiles * rows_bce, 128). NaN target padding
    # keeps the is_labeled mask (and therefore the masked mean) exact for padded elements.
    n_elems = B * C
    rows_min = max(1, -(-n_elems // 128))
    rows_bce = _round_up(-(-rows_min // num_tiles), 8)
    n_pad = num_tiles * rows_bce * 128

    def to_bce_slab(x, fill):
        flat = x.reshape(-1)
        flat = jnp.pad(flat, (0, n_pad - n_elems), constant_values=fill)
        return flat.reshape(num_tiles * rows_bce, 128)

    y_slab = to_bce_slab(y_pred, 0.0)
    yu_slab = to_bce_slab(y_pred_label_unchange, 0.0)
    t_slab = to_bce_slab(target, jnp.nan)

    # Feature-major embeddings: (B, D) -> (D, B_pad), batch on the 128-lane axis.
    def to_emb_slab(x):
        return jnp.pad(x.T, ((0, 0), (0, b_pad - B)))

    s_slab = to_emb_slab(s_pred)
    sc_slab = to_emb_slab(s_pred_label_change)
    su_slab = to_emb_slab(s_pred_label_unchange)

    itemsize = jnp.dtype(y_pred.dtype).itemsize
    cost = pl.CostEstimate(
        flops=int(20 * n_elems + 10 * D * B),
        transcendentals=int(4 * n_elems + 2 * B),
        bytes_accessed=int(itemsize * (3 * n_pad + 3 * D * b_pad) + 4 * num_tiles * 8 * 128),
    )

    out = pl.pallas_call(
        _make_kernel(B, tile_cols),
        out_shape=jax.ShapeDtypeStruct((num_tiles, 8, 128), jnp.float32),
        grid_spec=pltpu.PrefetchScalarGridSpec(
            num_scalar_prefetch=0,
            grid=(num_tiles,),
            in_specs=[
                pl.BlockSpec((rows_bce, 128), lambda i: (i, 0)),    # y_pred slab
                pl.BlockSpec((rows_bce, 128), lambda i: (i, 0)),    # y_pred_label_unchange slab
                pl.BlockSpec((rows_bce, 128), lambda i: (i, 0)),    # target slab
                pl.BlockSpec((D, tile_cols), lambda i: (0, i)),     # s_pred^T
                pl.BlockSpec((D, tile_cols), lambda i: (0, i)),     # s_pred_label_change^T
                pl.BlockSpec((D, tile_cols), lambda i: (0, i)),     # s_pred_label_unchange^T
            ],
            out_specs=pl.BlockSpec((1, 8, 128), lambda i: (i, 0, 0)),
        ),
        compiler_params=pltpu.CompilerParams(
            dimension_semantics=("parallel",),      # independent partial sums -> both v7x TCs
            vmem_limit_bytes=32 * 1024 * 1024,      # safe on v5e/v6e/v7x for these tile sizes
        ),
        cost_estimate=cost,
    )(y_slab, yu_slab, t_slab, s_slab, sc_slab, su_slab)

    # ---- tiny final combine (sums/counts, not mean-of-means -> exact on ragged tiles) ----
    sums = jnp.sum(out[:, :, 0], axis=0)
    loss_target = sums[0] / sums[2]
    loss_target_label_unchange = sums[1] / sums[2]
    loss_target_total = beta2 * loss_target + 0.15 * loss_target_label_unchange
    loss_close_cos = sums[3] / B
    loss_far_cos = sums[4] / B
    # TODO(synk): wandb.log(...) side effects have no Pallas equivalent.
    # TODO(synk): reconstruction_loss_max (torch.linalg.inv) is only logged in the 'cos_loss'
    #             branch (it contributes to Loss only under 'pair_loss_cos'), so it is not part
    #             of the returned value and is not implemented; other criterion_name branches
    #             (pair_loss / pair_loss_cos / pair_loss_triplet / pearson_loss) are not ported.
    return loss_target_total + loss_close_cos + loss_far_cos


def _reference(y_pred, y_pred_label_unchange, target, s_pred, s_change, s_unchange, beta_set):
    """Pure-JAX reference of the same math (sanity check)."""
    _b1, beta2, _b3 = beta_set
    y = y_pred.astype(jnp.float32)
    yu = y_pred_label_unchange.astype(jnp.float32)
    t = target.astype(jnp.float32)
    mask = t == t
    t_safe = jnp.where(mask, t, 0.0)

    def bce_mean(x):
        e = jnp.maximum(x, 0.0) - x * t_safe + jnp.log1p(jnp.exp(-jnp.abs(x)))
        return jnp.sum(jnp.where(mask, e, 0.0)) / jnp.sum(mask.astype(jnp.float32))

    loss_target_total = beta2 * bce_mean(y) + 0.15 * bce_mean(yu)

    def cos(a, b):
        a = a.astype(jnp.float32)
        b = b.astype(jnp.float32)
        num = jnp.sum(a * b, axis=1)
        den = jnp.sqrt((jnp.sum(a * a, axis=1) + _EPS_COS) * (jnp.sum(b * b, axis=1) + _EPS_COS))
        return num / den

    loss_close = jnp.mean(1.0 - cos(s_pred, s_change))
    loss_far = jnp.mean(jnp.maximum(cos(s_pred, s_unchange), 0.0))
    return loss_target_total + loss_close + loss_far


if __name__ == "__main__":
    beta_set = (1.0, 1.0, 1.0)   # (beta1, beta2, beta3) from __init__

    B, C, D = 8, 4, 32
    key = jax.random.PRNGKey(0)
    k1, k2, k3, k4, k5, k6 = jax.random.split(key, 6)

    y_pred = jax.random.normal(k1, (B, C), dtype=jnp.float32)
    y_pred_label_unchange = jax.random.normal(k2, (B, C), dtype=jnp.float32)
    # Multi-label float targets in {0,1}; mark one entry unlabeled with NaN so the
    # `is_labeled = target == target` mask is actually exercised.
    target = (jax.random.uniform(k3, (B, C)) > 0.5).astype(jnp.float32)
    target = target.at[0, 1].set(jnp.nan)

    s_pred = jax.random.normal(k4, (B, D), dtype=jnp.float32)
    s_pred_label_change = jax.random.normal(k5, (B, D), dtype=jnp.float32)
    s_pred_label_unchange = jax.random.normal(k6, (B, D), dtype=jnp.float32)

    loss = disent_criterion_cos_loss(y_pred, y_pred_label_unchange, target,
                                     s_pred, s_pred_label_change, s_pred_label_unchange,
                                     beta_set=beta_set)
    loss = jax.block_until_ready(loss)

    ref = _reference(y_pred, y_pred_label_unchange, target,
                     s_pred, s_pred_label_change, s_pred_label_unchange, beta_set)
    assert jnp.allclose(loss, ref, rtol=1e-5, atol=1e-5), (loss, ref)

    print("KERNEL_OK")
</pallas_src>

<mosaic_0001>
module attributes {stable_mosaic.version = 11 : i64} {
  func.func @kernel(%arg0: i32, %arg1: memref<8x128xf32, #tpu.memory_space<vmem>>, %arg2: memref<8x128xf32, #tpu.memory_space<vmem>>, %arg3: memref<8x128xf32, #tpu.memory_space<vmem>>, %arg4: memref<32x128xf32, #tpu.memory_space<vmem>>, %arg5: memref<32x128xf32, #tpu.memory_space<vmem>>, %arg6: memref<32x128xf32, #tpu.memory_space<vmem>>, %arg7: memref<1x8x128xf32, #tpu.memory_space<vmem>>) attributes {dimension_semantics = [#tpu.dimension_semantics<parallel>], iteration_bounds = array<i64: 1>, scalar_prefetch = 0 : i64, scratch_operands = 0 : i64, tpu.core_type = #tpu.core_type<tc>, window_params = [{transform_indices = @transform_0, window_bounds = array<i64: 8, 128>}, {transform_indices = @transform_1, window_bounds = array<i64: 8, 128>}, {transform_indices = @transform_2, window_bounds = array<i64: 8, 128>}, {transform_indices = @transform_3, window_bounds = array<i64: 32, 128>}, {transform_indices = @transform_4, window_bounds = array<i64: 32, 128>}, {transform_indices = @transform_5, window_bounds = array<i64: 32, 128>}, {transform_indices = @transform_6, window_bounds = array<i64: 1, 8, 128>}]} {
    %c0 = arith.constant 0 : index
    %c0_0 = arith.constant 0 : index
    %0 = vector.load %arg1[%c0, %c0_0] : memref<8x128xf32, #tpu.memory_space<vmem>>, vector<8x128xf32>
    %c0_1 = arith.constant 0 : index
    %c0_2 = arith.constant 0 : index
    %1 = vector.load %arg2[%c0_1, %c0_2] : memref<8x128xf32, #tpu.memory_space<vmem>>, vector<8x128xf32>
    %c0_3 = arith.constant 0 : index
    %c0_4 = arith.constant 0 : index
    %2 = vector.load %arg3[%c0_3, %c0_4] : memref<8x128xf32, #tpu.memory_space<vmem>>, vector<8x128xf32>
    %3 = arith.cmpf oeq, %2, %2 : vector<8x128xf32>
    %cst = arith.constant 0.000000e+00 : f32
    %4 = vector.broadcast %cst : f32 to vector<8x128xf32>
    %5 = arith.select %3, %2, %4 : vector<8x128xi1>, vector<8x128xf32>
    %cst_5 = arith.constant 0.000000e+00 : f32
    %6 = vector.broadcast %cst_5 : f32 to vector<8x128xf32>
    %7 = arith.maximumf %0, %6 : vector<8x128xf32>
    %8 = arith.mulf %0, %5 : vector<8x128xf32>
    %9 = arith.subf %7, %8 : vector<8x128xf32>
    %10 = math.absf %0 : vector<8x128xf32>
    %cst_6 = arith.constant 0.000000e+00 : f32
    %11 = vector.broadcast %cst_6 : f32 to vector<8x128xf32>
    %12 = arith.subf %11, %10 : vector<8x128xf32>
    %13 = math.exp %12 : vector<8x128xf32>
    %14 = math.log1p %13 : vector<8x128xf32>
    %15 = arith.addf %9, %14 : vector<8x128xf32>
    %cst_7 = arith.constant 0.000000e+00 : f32
    %16 = vector.broadcast %cst_7 : f32 to vector<8x128xf32>
    %17 = arith.select %3, %15, %16 : vector<8x128xi1>, vector<8x128xf32>
    %18 = vector.shape_cast %17 : vector<8x128xf32> to vector<1x8x128xf32>
    %cst_8 = arith.constant dense<0.000000e+00> : vector<1xf32>
    %19 = vector.multi_reduction <add>, %18, %cst_8 [1, 2] : vector<1x8x128xf32> to vector<1xf32>
    %20 = vector.shape_cast %19 : vector<1xf32> to vector<1x1x1xf32>
    %21 = vector.extract %20[0, 0, 0] : f32 from vector<1x1x1xf32>
    %cst_9 = arith.constant 0.000000e+00 : f32
    %22 = vector.broadcast %cst_9 : f32 to vector<8x128xf32>
    %23 = arith.maximumf %1, %22 : vector<8x128xf32>
    %24 = arith.mulf %1, %5 : vector<8x128xf32>
    %25 = arith.subf %23, %24 : vector<8x128xf32>
    %26 = math.absf %1 : vector<8x128xf32>
    %cst_10 = arith.constant 0.000000e+00 : f32
    %27 = vector.broadcast %cst_10 : f32 to vector<8x128xf32>
    %28 = arith.subf %27, %26 : vector<8x128xf32>
    %29 = math.exp %28 : vector<8x128xf32>
    %30 = math.log1p %29 : vector<8x128xf32>
    %31 = arith.addf %25, %30 : vector<8x128xf32>
    %cst_11 = arith.constant 0.000000e+00 : f32
    %32 = vector.broadcast %cst_11 : f32 to vector<8x128xf32>
    %33 = arith.select %3, %31, %32 : vector<8x128xi1>, vector<8x128xf32>
    %34 = vector.shape_cast %33 : vector<8x128xf32> to vector<1x8x128xf32>
    %cst_12 = arith.constant dense<0.000000e+00> : vector<1xf32>
    %35 = vector.multi_reduction <add>, %34, %cst_12 [1, 2] : vector<1x8x128xf32> to vector<1xf32>
    %36 = vector.shape_cast %35 : vector<1xf32> to vector<1x1x1xf32>
    %37 = vector.extract %36[0, 0, 0] : f32 from vector<1x1x1xf32>
    %38 = arith.extui %3 : vector<8x128xi1> to vector<8x128xi32>
    %39 = arith.sitofp %38 : vector<8x128xi32> to vector<8x128xf32>
    %40 = vector.shape_cast %39 : vector<8x128xf32> to vector<1x8x128xf32>
    %cst_13 = arith.constant dense<0.000000e+00> : vector<1xf32>
    %41 = vector.multi_reduction <add>, %40, %cst_13 [1, 2] : vector<1x8x128xf32> to vector<1xf32>
    %42 = vector.shape_cast %41 : vector<1xf32> to vector<1x1x1xf32>
    %43 = vector.extract %42[0, 0, 0] : f32 from vector<1x1x1xf32>
    %c0_14 = arith.constant 0 : index
    %c0_15 = arith.constant 0 : index
    %44 = vector.load %arg4[%c0_14, %c0_15] : memref<32x128xf32, #tpu.memory_space<vmem>>, vector<32x128xf32>
    %c0_16 = arith.constant 0 : index
    %c0_17 = arith.constant 0 : index
    %45 = vector.load %arg5[%c0_16, %c0_17] : memref<32x128xf32, #tpu.memory_space<vmem>>, vector<32x128xf32>
    %c0_18 = arith.constant 0 : index
    %c0_19 = arith.constant 0 : index
    %46 = vector.load %arg6[%c0_18, %c0_19] : memref<32x128xf32, #tpu.memory_space<vmem>>, vector<32x128xf32>
    %47 = tpu.iota {dimensions = array<i32: 1>} : vector<1x128xi32>
    %c128_i32 = arith.constant 128 : i32
    %48 = arith.muli %arg0, %c128_i32 : i32
    %49 = vector.broadcast %48 : i32 to vector<1x128xi32>
    %50 = arith.addi %49, %47 : vector<1x128xi32>
    %c8_i32 = arith.constant 8 : i32
    %51 = vector.broadcast %c8_i32 : i32 to vector<1x128xi32>
    %52 = arith.cmpi slt, %50, %51 : vector<1x128xi32>
    %53 = arith.mulf %44, %44 : vector<32x128xf32>
    %cst_20 = arith.constant dense<0.000000e+00> : vector<128xf32>
    %54 = vector.multi_reduction <add>, %53, %cst_20 [0] : vector<32x128xf32> to vector<128xf32>
    %55 = vector.shape_cast %54 : vector<128xf32> to vector<1x128xf32>
    %cst_21 = arith.constant 9.99999996E-13 : f32
    %56 = vector.broadcast %cst_21 : f32 to vector<1x128xf32>
    %57 = arith.addf %55, %56 : vector<1x128xf32>
    %58 = arith.mulf %44, %45 : vector<32x128xf32>
    %cst_22 = arith.constant dense<0.000000e+00> : vector<128xf32>
    %59 = vector.multi_reduction <add>, %58, %cst_22 [0] : vector<32x128xf32> to vector<128xf32>
    %60 = vector.shape_cast %59 : vector<128xf32> to vector<1x128xf32>
    %61 = arith.mulf %45, %45 : vector<32x128xf32>
    %cst_23 = arith.constant dense<0.000000e+00> : vector<128xf32>
    %62 = vector.multi_reduction <add>, %61, %cst_23 [0] : vector<32x128xf32> to vector<128xf32>
    %63 = vector.shape_cast %62 : vector<128xf32> to vector<1x128xf32>
    %cst_24 = arith.constant 9.99999996E-13 : f32
    %64 = vector.broadcast %cst_24 : f32 to vector<1x128xf32>
    %65 = arith.addf %63, %64 : vector<1x128xf32>
    %66 = arith.mulf %57, %65 : vector<1x128xf32>
    %67 = math.rsqrt %66 : vector<1x128xf32>
    %68 = arith.mulf %60, %67 : vector<1x128xf32>
    %cst_25 = arith.constant 1.000000e+00 : f32
    %69 = vector.broadcast %cst_25 : f32 to vector<1x128xf32>
    %70 = arith.subf %69, %68 : vector<1x128xf32>
    %cst_26 = arith.constant 0.000000e+00 : f32
    %71 = vector.broadcast %cst_26 : f32 to vector<1x128xf32>
    %72 = arith.select %52, %70, %71 : vector<1x128xi1>, vector<1x128xf32>
    %73 = vector.shape_cast %72 : vector<1x128xf32> to vector<1x1x128xf32>
    %cst_27 = arith.constant dense<0.000000e+00> : vector<1xf32>
    %74 = vector.multi_reduction <add>, %73, %cst_27 [1, 2] : vector<1x1x128xf32> to vector<1xf32>
    %75 = vector.shape_cast %74 : vector<1xf32> to vector<1x1x1xf32>
    %76 = vector.extract %75[0, 0, 0] : f32 from vector<1x1x1xf32>
    %77 = arith.mulf %44, %46 : vector<32x128xf32>
    %cst_28 = arith.constant dense<0.000000e+00> : vector<128xf32>
    %78 = vector.multi_reduction <add>, %77, %cst_28 [0] : vector<32x128xf32> to vector<128xf32>
    %79 = vector.shape_cast %78 : vector<128xf32> to vector<1x128xf32>
    %80 = arith.mulf %46, %46 : vector<32x128xf32>
    %cst_29 = arith.constant dense<0.000000e+00> : vector<128xf32>
    %81 = vector.multi_reduction <add>, %80, %cst_29 [0] : vector<32x128xf32> to vector<128xf32>
    %82 = vector.shape_cast %81 : vector<128xf32> to vector<1x128xf32>
    %cst_30 = arith.constant 9.99999996E-13 : f32
    %83 = vector.broadcast %cst_30 : f32 to vector<1x128xf32>
    %84 = arith.addf %82, %83 : vector<1x128xf32>
    %85 = arith.mulf %57, %84 : vector<1x128xf32>
    %86 = math.rsqrt %85 : vector<1x128xf32>
    %87 = arith.mulf %79, %86 : vector<1x128xf32>
    %cst_31 = arith.constant 0.000000e+00 : f32
    %88 = vector.broadcast %cst_31 : f32 to vector<1x128xf32>
    %89 = arith.maximumf %87, %88 : vector<1x128xf32>
    %cst_32 = arith.constant 0.000000e+00 : f32
    %90 = vector.broadcast %cst_32 : f32 to vector<1x128xf32>
    %91 = arith.select %52, %89, %90 : vector<1x128xi1>, vector<1x128xf32>
    %92 = vector.shape_cast %91 : vector<1x128xf32> to vector<1x1x128xf32>
    %cst_33 = arith.constant dense<0.000000e+00> : vector<1xf32>
    %93 = vector.multi_reduction <add>, %92, %cst_33 [1, 2] : vector<1x1x128xf32> to vector<1xf32>
    %94 = vector.shape_cast %93 : vector<1xf32> to vector<1x1x1xf32>
    %95 = vector.extract %94[0, 0, 0] : f32 from vector<1x1x1xf32>
    %96 = tpu.iota {dimensions = array<i32: 0>} : vector<8x128xi32>
    %c0_i32 = arith.constant 0 : i32
    %97 = vector.broadcast %c0_i32 : i32 to vector<8x128xi32>
    %98 = arith.cmpi eq, %96, %97 : vector<8x128xi32>
    %cst_34 = arith.constant 0.000000e+00 : f32
    %99 = vector.broadcast %cst_34 : f32 to vector<8x128xf32>
    %100 = vector.broadcast %21 : f32 to vector<8x128xf32>
    %101 = arith.select %98, %100, %99 : vector<8x128xi1>, vector<8x128xf32>
    %c1_i32 = arith.constant 1 : i32
    %102 = vector.broadcast %c1_i32 : i32 to vector<8x128xi32>
    %103 = arith.cmpi eq, %96, %102 : vector<8x128xi32>
    %104 = vector.broadcast %37 : f32 to vector<8x128xf32>
    %105 = arith.select %103, %104, %101 : vector<8x128xi1>, vector<8x128xf32>
    %c2_i32 = arith.constant 2 : i32
    %106 = vector.broadcast %c2_i32 : i32 to vector<8x128xi32>
    %107 = arith.cmpi eq, %96, %106 : vector<8x128xi32>
    %108 = vector.broadcast %43 : f32 to vector<8x128xf32>
    %109 = arith.select %107, %108, %105 : vector<8x128xi1>, vector<8x128xf32>
    %c3_i32 = arith.constant 3 : i32
    %110 = vector.broadcast %c3_i32 : i32 to vector<8x128xi32>
    %111 = arith.cmpi eq, %96, %110 : vector<8x128xi32>
    %112 = vector.broadcast %76 : f32 to vector<8x128xf32>
    %113 = arith.select %111, %112, %109 : vector<8x128xi1>, vector<8x128xf32>
    %c4_i32 = arith.constant 4 : i32
    %114 = vector.broadcast %c4_i32 : i32 to vector<8x128xi32>
    %115 = arith.cmpi eq, %96, %114 : vector<8x128xi32>
    %116 = vector.broadcast %95 : f32 to vector<8x128xf32>
    %117 = arith.select %115, %116, %113 : vector<8x128xi1>, vector<8x128xf32>
    %c0_35 = arith.constant 0 : index
    %c0_36 = arith.constant 0 : index
    %c0_37 = arith.constant 0 : index
    %118 = vector.load %arg7[%c0_35, %c0_36, %c0_37] : memref<1x8x128xf32, #tpu.memory_space<vmem>>, vector<1x8x128xf32>
    %119 = vector.shape_cast %118 : vector<1x8x128xf32> to vector<8x128xf32>
    %120 = vector.shape_cast %117 : vector<8x128xf32> to vector<1x8x128xf32>
    tpu.vector_store %arg7[%c0_35, %c0_36, %c0_37], %120 {strides = array<i32>} : memref<1x8x128xf32, #tpu.memory_space<vmem>>, vector<1x8x128xf32>,
    return
  }
  func.func @transform_0(%arg0: i32) -> (i32, i32) {
    %c0_i32 = arith.constant 0 : i32
    %c0_i32_0 = arith.constant 0 : i32
    return %arg0, %c0_i32 : i32, i32
  }
  func.func @transform_1(%arg0: i32) -> (i32, i32) {
    %c0_i32 = arith.constant 0 : i32
    %c0_i32_0 = arith.constant 0 : i32
    return %arg0, %c0_i32 : i32, i32
  }
  func.func @transform_2(%arg0: i32) -> (i32, i32) {
    %c0_i32 = arith.constant 0 : i32
    %c0_i32_0 = arith.constant 0 : i32
    return %arg0, %c0_i32 : i32, i32
  }
  func.func @transform_3(%arg0: i32) -> (i32, i32) {
    %c0_i32 = arith.constant 0 : i32
    %c0_i32_0 = arith.constant 0 : i32
    return %c0_i32, %arg0 : i32, i32
  }
  func.func @transform_4(%arg0: i32) -> (i32, i32) {
    %c0_i32 = arith.constant 0 : i32
    %c0_i32_0 = arith.constant 0 : i32
    return %c0_i32, %arg0 : i32, i32
  }
  func.func @transform_5(%arg0: i32) -> (i32, i32) {
    %c0_i32 = arith.constant 0 : i32
    %c0_i32_0 = arith.constant 0 : i32
    return %c0_i32, %arg0 : i32, i32
  }
  func.func @transform_6(%arg0: i32) -> (i32, i32, i32) {
    %c0_i32 = arith.constant 0 : i32
    %c0_i32_0 = arith.constant 0 : i32
    %c0_i32_1 = arith.constant 0 : i32
    return %arg0, %c0_i32, %c0_i32_0 : i32, i32, i32
  }
}

</mosaic_0001>

<llo_original>
// kernel: tpu_custom_call.1
$region0: #{tpu_custom_call.1}
  #allocation0 [shape = 'u32[]', space=smem, size = 0x4, offset = 0x4, fixed_abs, tag = 'smem constant byte address 0x4 - core index']
  #allocation1 [shape = 'u32[144,128]{1,0:T(1,128)}', space=vmem, size = 0x12000, scoped, tag = 'internal scratch']
  %s0 = inlined_call_operand.hbm [shape: f32[8,128], index: 0, kind: input, shape index: {}]
  %s1 = inlined_call_operand.hbm [shape: f32[8,128], index: 1, kind: input, shape index: {}]
  %s2 = inlined_call_operand.hbm [shape: f32[8,128], index: 2, kind: input, shape index: {}]
  %s3 = inlined_call_operand.hbm [shape: f32[32,128], index: 3, kind: input, shape index: {}]
  %s4 = inlined_call_operand.hbm [shape: f32[32,128], index: 4, kind: input, shape index: {}]
  %s5 = inlined_call_operand.hbm [shape: f32[32,128], index: 5, kind: input, shape index: {}]
  %s6 = inlined_call_operand.hbm [shape: f32[1,8,128], index: 6, kind: output, shape index: {}]
  %s7 = sld [smem:[#allocation0]]
  $region58: #{tpu_custom_call.1} parent=0
    _
  %s9 = ssub.s32 1, %s7
  %s10 = scalar_select 0, %s9, %s7
  $region1: #{tpu_custom_call.1} parent=0
    #allocation2 [shape = 'u8[4096]{0}', space=vmem, size = 0x1000, scoped, tag = 'input window, operand 0, single buffered']
    #allocation3 [shape = 's32[1]{0}', space=sflag, size = 0x4, scoped, tag = 'scoped memory for tpu_custom_call.1']
    #allocation4 [shape = 's32[1]{0}', space=sflag, size = 0x4, scoped, tag = 'scoped memory for tpu_custom_call.1']
    #allocation5 [shape = 'u8[4096]{0}', space=vmem, size = 0x1000, scoped, tag = 'input window, operand 1, single buffered']
    #allocation6 [shape = 's32[1]{0}', space=sflag, size = 0x4, scoped, tag = 'scoped memory for tpu_custom_call.1']
    #allocation7 [shape = 'u8[4096]{0}', space=vmem, size = 0x1000, scoped, tag = 'input window, operand 2, single buffered']
    #allocation8 [shape = 'u8[16384]{0}', space=vmem, size = 0x4000, scoped, tag = 'input window, operand 3, single buffered']
    #allocation9 [shape = 's32[1]{0}', space=sflag, size = 0x4, scoped, tag = 'scoped memory for tpu_custom_call.1']
    #allocation10 [shape = 'u8[16384]{0}', space=vmem, size = 0x4000, scoped, tag = 'input window, operand 4, single buffered']
    #allocation11 [shape = 'u8[16384]{0}', space=vmem, size = 0x4000, scoped, tag = 'input window, operand 5, single buffered']
    #allocation12 [shape = 's32[1]{0}', space=sflag, size = 0x4, scoped, tag = 'scoped memory for tpu_custom_call.1']
    #allocation13 [shape = 'u8[4096]{0}', space=vmem, size = 0x1000, scoped, tag = 'output window, operand 0, single buffered']
    %11 = vsyncpa [#allocation3], 0
    %12 = vsyncpa [#allocation6], 0
    %13 = vsyncpa [#allocation9], 0
    %14 = vsyncpa [#allocation12], 0
    %15 = vsyncpa [#allocation4], 0
    // Predicated region
    $region2: #{tpu_custom_call.1} parent=1 // pred_check
      _
    $region3: #{tpu_custom_call.1} parent=1 // pred_check_branch
      %17 = sbr.rel (0) target = $region5
    $region4: #{tpu_custom_call.1} parent=1 // pred_region
      %s19 = ssub.s32 128, 128
      %20 = vsyncadd [#allocation3], %s19
      %s22 = sshll.u32 [#allocation2], 4
      %s23 = int_to_ptr.vmem [resolvable:$true] %s22
      %25 = dma.hbm_to_vmem [thread:$0]  %s0, 128, %s23, [#allocation3]
    $region5: #{tpu_custom_call.1} parent=1 // pred_fallthru
      _
    // Predicated region
    $region6: #{tpu_custom_call.1} parent=1 // pred_check
      _
    $region7: #{tpu_custom_call.1} parent=1 // pred_check_branch
      %27 = sbr.rel (0) target = $region9
    $region8: #{tpu_custom_call.1} parent=1 // pred_region
      %s29 = ssub.s32 128, 128
      %30 = vsyncadd [#allocation6], %s29
      %s32 = sshll.u32 [#allocation5], 4
      %s33 = int_to_ptr.vmem [resolvable:$true] %s32
      %35 = dma.hbm_to_vmem [thread:$0]  %s1, 128, %s33, [#allocation6]
    $region9: #{tpu_custom_call.1} parent=1 // pred_fallthru
      _
    // Predicated region
    $region10: #{tpu_custom_call.1} parent=1 // pred_check
      _
    $region11: #{tpu_custom_call.1} parent=1 // pred_check_branch
      %37 = sbr.rel (0) target = $region13
    $region12: #{tpu_custom_call.1} parent=1 // pred_region
      %s39 = ssub.s32 128, 128
      %40 = vsyncadd [#allocation6], %s39
      %s42 = sshll.u32 [#allocation7], 4
      %s43 = int_to_ptr.vmem [resolvable:$true] %s42
      %45 = dma.hbm_to_vmem [thread:$0]  %s2, 128, %s43, [#allocation6]
    $region13: #{tpu_custom_call.1} parent=1 // pred_fallthru
      _
    // Predicated region
    $region14: #{tpu_custom_call.1} parent=1 // pred_check
      _
    $region15: #{tpu_custom_call.1} parent=1 // pred_check_branch
      %47 = sbr.rel (0) target = $region17
    $region16: #{tpu_custom_call.1} parent=1 // pred_region
      %s49 = ssub.s32 512, 512
      %50 = vsyncadd [#allocation9], %s49
      %s51 = sshll.u32 [#allocation8], 4
      %s52 = int_to_ptr.vmem [resolvable:$true] %s51
      %57 = dma.hbm_to_vmem [thread:$0]  %s3, 512, %s52, [#allocation9], 128, 128, 8
    $region17: #{tpu_custom_call.1} parent=1 // pred_fallthru
      _
    // Predicated region
    $region18: #{tpu_custom_call.1} parent=1 // pred_check
      _
    $region19: #{tpu_custom_call.1} parent=1 // pred_check_branch
      %59 = sbr.rel (0) target = $region21
    $region20: #{tpu_custom_call.1} parent=1 // pred_region
      %s61 = ssub.s32 512, 512
      %62 = vsyncadd [#allocation9], %s61
      %s63 = sshll.u32 [#allocation10], 4
      %s64 = int_to_ptr.vmem [resolvable:$true] %s63
      %69 = dma.hbm_to_vmem [thread:$0]  %s4, 512, %s64, [#allocation9], 128, 128, 8
    $region21: #{tpu_custom_call.1} parent=1 // pred_fallthru
      _
    // Predicated region
    $region22: #{tpu_custom_call.1} parent=1 // pred_check
      _
    $region23: #{tpu_custom_call.1} parent=1 // pred_check_branch
      %71 = sbr.rel (0) target = $region25
    $region24: #{tpu_custom_call.1} parent=1 // pred_region
      %s73 = ssub.s32 512, 512
      %74 = vsyncadd [#allocation12], %s73
      %s75 = sshll.u32 [#allocation11], 4
      %s76 = int_to_ptr.vmem [resolvable:$true] %s75
      %81 = dma.hbm_to_vmem [thread:$0]  %s5, 512, %s76, [#allocation12], 128, 128, 8
    $region25: #{tpu_custom_call.1} parent=1 // pred_fallthru
      _
    // Predicated region
    $region26: #{tpu_custom_call.1} parent=1 // pred_check
      _
    $region27: #{tpu_custom_call.1} parent=1 // pred_check_branch
      %83 = sbr.rel (0) target = $region29
    $region28: #{tpu_custom_call.1} parent=1 // pred_region
      %84 = dma.done [#allocation3], 128
    $region29: #{tpu_custom_call.1} parent=1 // pred_fallthru
      _
    // Predicated region
    $region30: #{tpu_custom_call.1} parent=1 // pred_check
      _
    $region31: #{tpu_custom_call.1} parent=1 // pred_check_branch
      %86 = sbr.rel (0) target = $region33
    $region32: #{tpu_custom_call.1} parent=1 // pred_region
      %87 = dma.done [#allocation6], 128
    $region33: #{tpu_custom_call.1} parent=1 // pred_fallthru
      _
    // Predicated region
    $region34: #{tpu_custom_call.1} parent=1 // pred_check
      _
    $region35: #{tpu_custom_call.1} parent=1 // pred_check_branch
      %89 = sbr.rel (0) target = $region37
    $region36: #{tpu_custom_call.1} parent=1 // pred_region
      %90 = dma.done [#allocation6], 128
    $region37: #{tpu_custom_call.1} parent=1 // pred_fallthru
      _
    // Predicated region
    $region38: #{tpu_custom_call.1} parent=1 // pred_check
      _
    $region39: #{tpu_custom_call.1} parent=1 // pred_check_branch
      %92 = sbr.rel (0) target = $region41
    $region40: #{tpu_custom_call.1} parent=1 // pred_region
      %93 = dma.done [#allocation9], 512
    $region41: #{tpu_custom_call.1} parent=1 // pred_fallthru
      _
    // Predicated region
    $region42: #{tpu_custom_call.1} parent=1 // pred_check
      _
    $region43: #{tpu_custom_call.1} parent=1 // pred_check_branch
      %95 = sbr.rel (0) target = $region45
    $region44: #{tpu_custom_call.1} parent=1 // pred_region
      %96 = dma.done [#allocation9], 512
    $region45: #{tpu_custom_call.1} parent=1 // pred_fallthru
      _
    // Predicated region
    $region46: #{tpu_custom_call.1} parent=1 // pred_check
      _
    $region47: #{tpu_custom_call.1} parent=1 // pred_check_branch
      %98 = sbr.rel (0) target = $region49
    $region48: #{tpu_custom_call.1} parent=1 // pred_region
      %99 = dma.done [#allocation12], 512
    $region49: #{tpu_custom_call.1} parent=1 // pred_fallthru
      _
    %v100 = vld [vmem:[#allocation2] sm:$0xff]
    %v101 = vld [vmem:[#allocation5] sm:$0xff]
    %v102 = vld [vmem:[#allocation7] sm:$0xff]
    %vm103 = vcmp.eq.f32.partialorder %v102, %v102
    %v104 = vsel %vm103, %v102, 0.0
    %v105 = vmax.f32 %v100, 0.0
    %v106 = vmul.f32 %v100, %v104
    %v107 = vsub.f32 %v105, %v106
    %v108 = vand.u32 2147483647, %v100
    %v109 = vsub.f32 0.0, %v108
    %v110 = vmul.f32 %v109, 1.442695
    %v111 = vpow.pop %v110
    %v112 = vadd.f32 %v111, 1.0
    %v113 = vlog2.pop %v112
    %v114 = vmul.f32 %v113, 0.6931472
    %v115 = vmul.f32 -0.5, %v111
    %v116 = vadd.f32 %v115, 1.0
    %v117 = vmul.f32 %v116, %v111
    %v118 = vand.u32 2147483647, %v111
    %vm119 = vcmp.lt.f32.partialorder %v118, 0.0004427343
    %v120 = vsel %vm119, %v117, %v114
    %v121 = vadd.f32 %v107, %v120
    %v122 = vsel %vm103, %v121, 0.0
    %123 = vadd.xlane.f32.xlu0 %v122
    %v124 = vpop.xlane.xlu0 %123
    %v125 = vrot.slane %v124, 4
    %v126 = vadd.f32 %v124, %v125
    %v127 = vrot.slane %v126, 2
    %v128 = vadd.f32 %v126, %v127
    %v129 = vrot.slane %v128, 1
    %v130 = vadd.f32 %v128, %v129
    %s131 = vtos %v130
    %v132 = vmax.f32 %v101, 0.0
    %v133 = vmul.f32 %v101, %v104
    %v134 = vsub.f32 %v132, %v133
    %v135 = vand.u32 2147483647, %v101
    %v136 = vsub.f32 0.0, %v135
    %v137 = vmul.f32 %v136, 1.442695
    %v138 = vpow.pop %v137
    %v139 = vadd.f32 %v138, 1.0
    %v140 = vlog2.pop %v139
    %v141 = vmul.f32 %v140, 0.6931472
    %v142 = vmul.f32 -0.5, %v138
    %v143 = vadd.f32 %v142, 1.0
    %v144 = vmul.f32 %v143, %v138
    %v145 = vand.u32 2147483647, %v138
    %vm146 = vcmp.lt.f32.partialorder %v145, 0.0004427343
    %v147 = vsel %vm146, %v144, %v141
    %v148 = vadd.f32 %v134, %v147
    %v149 = vsel %vm103, %v148, 0.0
    %150 = vadd.xlane.f32.xlu0 %v149
    %v151 = vpop.xlane.xlu0 %150
    %v152 = vrot.slane %v151, 4
    %v153 = vadd.f32 %v151, %v152
    %v154 = vrot.slane %v153, 2
    %v155 = vadd.f32 %v153, %v154
    %v156 = vrot.slane %v155, 1
    %v157 = vadd.f32 %v155, %v156
    %s158 = vtos %v157
    %v159 = vsel %vm103, 1, 0
    %v160 = vcvt.s32.f32 %v159
    %161 = vadd.xlane.f32.xlu0 %v160
    %v162 = vpop.xlane.xlu0 %161
    %v163 = vrot.slane %v162, 4
    %v164 = vadd.f32 %v162, %v163
    %v165 = vrot.slane %v164, 2
    %v166 = vadd.f32 %v164, %v165
    %v167 = vrot.slane %v166, 1
    %v168 = vadd.f32 %v166, %v167
    %s169 = vtos %v168
    %v170 = vld [vmem:[#allocation8] sm:$0xff]
    %v171 = vld [vmem:[#allocation8 + $0x8] sm:$0xff]
    %v172 = vld [vmem:[#allocation8 + $0x10] sm:$0xff]
    %v173 = vld [vmem:[#allocation8 + $0x18] sm:$0xff]
    %v174 = vld [vmem:[#allocation10] sm:$0xff]
    %v175 = vld [vmem:[#allocation10 + $0x8] sm:$0xff]
    %v176 = vld [vmem:[#allocation10 + $0x10] sm:$0xff]
    %v177 = vld [vmem:[#allocation10 + $0x18] sm:$0xff]
    %v178 = vld [vmem:[#allocation11] sm:$0xff]
    %v179 = vld [vmem:[#allocation11 + $0x8] sm:$0xff]
    %v180 = vld [vmem:[#allocation11 + $0x10] sm:$0xff]
    %v181 = vld [vmem:[#allocation11 + $0x18] sm:$0xff]
    %v182 = vlaneseq
    %v183 = vand.u32 %v182, 127
    %s184 = smul.u32 0, 128
    %v185 = vstv %s184
    %v186 = vadd.s32 %v185, %v183
    %vm187 = vcmp.lt.s32.totalorder %v186, 8
    %v188 = vmul.f32 %v170, %v170
    %v189 = vmul.f32 %v171, %v171
    %v190 = vmul.f32 %v172, %v172
    %v191 = vmul.f32 %v173, %v173
    %v192 = vadd.f32 %v188, %v189
    %v193 = vadd.f32 %v192, %v190
    %v194 = vadd.f32 %v193, %v191
    %v195 = vrot.slane %v194, 4
    %v196 = vadd.f32 %v194, %v195
    %v197 = vrot.slane %v196, 2
    %v198 = vadd.f32 %v196, %v197
    %v199 = vrot.slane %v198, 1
    %v200 = vadd.f32 %v198, %v199
    %v201 = vadd.f32 %v200, 1e-12
    %v202 = vmul.f32 %v170, %v174
    %v203 = vmul.f32 %v171, %v175
    %v204 = vmul.f32 %v172, %v176
    %v205 = vmul.f32 %v173, %v177
    %v206 = vadd.f32 %v202, %v203
    %v207 = vadd.f32 %v206, %v204
    %v208 = vadd.f32 %v207, %v205
    %v209 = vrot.slane %v208, 4
    %v210 = vadd.f32 %v208, %v209
    %v211 = vrot.slane %v210, 2
    %v212 = vadd.f32 %v210, %v211
    %v213 = vrot.slane %v212, 1
    %v214 = vadd.f32 %v212, %v213
    %v215 = vmul.f32 %v174, %v174
    %v216 = vmul.f32 %v175, %v175
    %v217 = vmul.f32 %v176, %v176
    %v218 = vmul.f32 %v177, %v177
    %v219 = vadd.f32 %v215, %v216
    %v220 = vadd.f32 %v219, %v217
    %v221 = vadd.f32 %v220, %v218
    %v222 = vrot.slane %v221, 4
    %v223 = vadd.f32 %v221, %v222
    %v224 = vrot.slane %v223, 2
    %v225 = vadd.f32 %v223, %v224
    %v226 = vrot.slane %v225, 1
    %v227 = vadd.f32 %v225, %v226
    %v228 = vadd.f32 %v227, 1e-12
    %v229 = vmul.f32 %v201, %v228
    %v230 = vrsqrt.pop %v229
    %v231 = vmul.f32 %v214, %v230
    %v232 = vsub.f32 1.0, %v231
    %v233 = vsel %vm187, %v232, 0.0
    %vm234 = vcmask 1040384
    %v235 = vsel %vm234, %v233, 0.0
    %236 = vadd.xlane.f32.xlu0 %v235
    %v237 = vpop.xlane.xlu0 %236
    %v238 = vrot.slane %v237, 4
    %v239 = vadd.f32 %v237, %v238
    %v240 = vrot.slane %v239, 2
    %v241 = vadd.f32 %v239, %v240
    %v242 = vrot.slane %v241, 1
    %v243 = vadd.f32 %v241, %v242
    %s244 = vtos %v243
    %v245 = vmul.f32 %v170, %v178
    %v246 = vmul.f32 %v171, %v179
    %v247 = vmul.f32 %v172, %v180
    %v248 = vmul.f32 %v173, %v181
    %v249 = vadd.f32 %v245, %v246
    %v250 = vadd.f32 %v249, %v247
    %v251 = vadd.f32 %v250, %v248
    %v252 = vrot.slane %v251, 4
    %v253 = vadd.f32 %v251, %v252
    %v254 = vrot.slane %v253, 2
    %v255 = vadd.f32 %v253, %v254
    %v256 = vrot.slane %v255, 1
    %v257 = vadd.f32 %v255, %v256
    %v258 = vmul.f32 %v178, %v178
    %v259 = vmul.f32 %v179, %v179
    %v260 = vmul.f32 %v180, %v180
    %v261 = vmul.f32 %v181, %v181
    %v262 = vadd.f32 %v258, %v259
    %v263 = vadd.f32 %v262, %v260
    %v264 = vadd.f32 %v263, %v261
    %v265 = vrot.slane %v264, 4
    %v266 = vadd.f32 %v264, %v265
    %v267 = vrot.slane %v266, 2
    %v268 = vadd.f32 %v266, %v267
    %v269 = vrot.slane %v268, 1
    %v270 = vadd.f32 %v268, %v269
    %v271 = vadd.f32 %v270, 1e-12
    %v272 = vmul.f32 %v201, %v271
    %v273 = vrsqrt.pop %v272
    %v274 = vmul.f32 %v257, %v273
    %v275 = vmax.f32 %v274, 0.0
    %v276 = vsel %vm187, %v275, 0.0
    %v277 = vsel %vm234, %v276, 0.0
    %278 = vadd.xlane.f32.xlu0 %v277
    %v279 = vpop.xlane.xlu0 %278
    %v280 = vrot.slane %v279, 4
    %v281 = vadd.f32 %v279, %v280
    %v282 = vrot.slane %v281, 2
    %v283 = vadd.f32 %v281, %v282
    %v284 = vrot.slane %v283, 1
    %v285 = vadd.f32 %v283, %v284
    %s286 = vtos %v285
    %v287 = vlaneseq
    %v288 = vshrl.u32 %v287, 7
    %vm289 = vcmp.eq.s32.totalorder %v288, 0
    %v290 = vstv %s131
    %v291 = vsel %vm289, %v290, 0.0
    %vm292 = vcmp.eq.s32.totalorder %v288, 1
    %v293 = vstv %s158
    %v294 = vsel %vm292, %v293, %v291
    %vm295 = vcmp.eq.s32.totalorder %v288, 2
    %v296 = vstv %s169
    %v297 = vsel %vm295, %v296, %v294
    %vm298 = vcmp.eq.s32.totalorder %v288, 3
    %v299 = vstv %s244
    %v300 = vsel %vm298, %v299, %v297
    %vm301 = vcmp.eq.s32.totalorder %v288, 4
    %v302 = vstv %s286
    %v303 = vsel %vm301, %v302, %v300
    %304 = vst [vmem:[#allocation13] sm:$0xff] %v303
    // Predicated region
    $region50: #{tpu_custom_call.1} parent=1 // pred_check
      _
    $region51: #{tpu_custom_call.1} parent=1 // pred_check_branch
      %306 = sbr.rel (0) target = $region53
    $region52: #{tpu_custom_call.1} parent=1 // pred_region
      %s308 = ssub.s32 128, 128
      %309 = vsyncadd [#allocation4], %s308
      %s311 = sshll.u32 [#allocation13], 4
      %s312 = int_to_ptr.vmem [resolvable:$true] %s311
      %314 = dma.vmem_to_hbm [thread:$0]  %s312, 128, %s6, [#allocation4]
    $region53: #{tpu_custom_call.1} parent=1 // pred_fallthru
      _
    // Predicated region
    $region54: #{tpu_custom_call.1} parent=1 // pred_check
      _
    $region55: #{tpu_custom_call.1} parent=1 // pred_check_branch
      %316 = sbr.rel (0) target = $region57
    $region56: #{tpu_custom_call.1} parent=1 // pred_region
      %317 = dma.done [#allocation4], 128
    $region57: #{tpu_custom_call.1} parent=1 // pred_fallthru
      _
    %318 = vsyncpa [#allocation3], 1
    %319 = vsyncpa [#allocation6], 1
    %320 = vsyncpa [#allocation9], 1
    %321 = vsyncpa [#allocation12], 1
    %322 = vsyncpa [#allocation4], 1

</llo_original>
